<compile_context>
chip_gen: v7x
topology: tpu7x:2x2x1
jax: 0.10.0
libtpu: 0.0.40
codegen_flags: <defaults>
</compile_context>

<pallas_src>
import functools
import numpy as np
import jax
import jax.numpy as jnp
from jax.experimental import pallas as pl
from jax.experimental.pallas import tpu as pltpu


# ----------------------------------------------------------------------------
# Deterministic parameter construction (glue, plain numpy)
# ----------------------------------------------------------------------------
def _hz_to_mel(f):
    # Slaney mel scale (librosa / nnAudio default, htk=False)
    f = np.asarray(f, dtype=np.float64)
    f_sp = 200.0 / 3.0
    mels = f / f_sp
    min_log_hz = 1000.0
    min_log_mel = min_log_hz / f_sp
    logstep = np.log(6.4) / 27.0
    return np.where(
        f >= min_log_hz,
        min_log_mel + np.log(np.maximum(f, 1e-10) / min_log_hz) / logstep,
        mels,
    )


def _mel_to_hz(m):
    m = np.asarray(m, dtype=np.float64)
    f_sp = 200.0 / 3.0
    freqs = f_sp * m
    min_log_hz = 1000.0
    min_log_mel = min_log_hz / f_sp
    logstep = np.log(6.4) / 27.0
    return np.where(
        m >= min_log_mel,
        min_log_hz * np.exp(logstep * (m - min_log_mel)),
        freqs,
    )


def mel_filterbank(sr, n_fft, n_mels, fmin=0.0, fmax=None):
    """Slaney-normalized triangular mel filterbank, shape (n_mels, n_fft//2+1)."""
    if fmax is None:
        fmax = sr / 2.0
    n_freq = n_fft // 2 + 1
    fft_freqs = np.linspace(0.0, sr / 2.0, n_freq)
    mel_pts = np.linspace(_hz_to_mel(fmin), _hz_to_mel(fmax), n_mels + 2)
    hz_pts = _mel_to_hz(mel_pts)
    fdiff = np.diff(hz_pts)
    ramps = hz_pts[:, None] - fft_freqs[None, :]
    fb = np.zeros((n_mels, n_freq), dtype=np.float64)
    for i in range(n_mels):
        lower = -ramps[i] / max(fdiff[i], 1e-10)
        upper = ramps[i + 2] / max(fdiff[i + 1], 1e-10)
        fb[i] = np.maximum(0.0, np.minimum(lower, upper))
    enorm = 2.0 / np.maximum(hz_pts[2 : n_mels + 2] - hz_pts[:n_mels], 1e-10)
    fb *= enorm[:, None]
    return fb.astype(np.float32)


def windowed_dft_basis(n_fft):
    """Hann-windowed DFT basis (cos, sin), each shape (n_freq, n_fft)."""
    n_freq = n_fft // 2 + 1
    n = np.arange(n_fft, dtype=np.float64)
    # periodic Hann window (torch / scipy fftbins=True default)
    window = 0.5 - 0.5 * np.cos(2.0 * np.pi * n / n_fft)
    k = np.arange(n_freq, dtype=np.float64)[:, None]
    ang = 2.0 * np.pi * k * n[None, :] / n_fft
    wcos = (np.cos(ang) * window[None, :]).astype(np.float32)
    wsin = (np.sin(ang) * window[None, :]).astype(np.float32)
    return wcos, wsin


def _round_up(x, m):
    return ((x + m - 1) // m) * m


@functools.lru_cache(maxsize=None)
def build_melspec_weights(sample_rate, n_fft, n_fft_pad, f_pad, n_mels, n_mels_pad):
    """Zero-padded [cos | sin] DFT basis and mel filterbank, host-side bf16.

    Returns:
      basis: (n_fft_pad, 2*f_pad) bf16 — cols [0:f_pad] = cos, [f_pad:] = sin.
      mel_t: (f_pad, n_mels_pad)  bf16.
    All padding rows / columns are exactly zero, so results are unchanged.
    """
    n_freq = n_fft // 2 + 1
    wcos, wsin = windowed_dft_basis(n_fft)               # (n_freq, n_fft)
    melfb = mel_filterbank(sample_rate, n_fft, n_mels)   # (n_mels, n_freq)

    basis = np.zeros((n_fft_pad, 2 * f_pad), np.float32)
    basis[:n_fft, :n_freq] = wcos.T
    basis[:n_fft, f_pad:f_pad + n_freq] = wsin.T

    mel_t = np.zeros((f_pad, n_mels_pad), np.float32)
    mel_t[:n_freq, :n_mels] = melfb.T

    # host-side bf16 cast: avoids baking f32 constants and an on-device cast
    return basis.astype(jnp.bfloat16), mel_t.astype(jnp.bfloat16)


# ----------------------------------------------------------------------------
# Tiling / VMEM planning (v7x-safe: budget < 64 MiB per TensorCore)
# ----------------------------------------------------------------------------
_SINGLE_BUFFER_THRESHOLD = 4 << 20   # resident weights above this are Buffered(1)
_VMEM_BUDGET = 56 << 20


def _choose_tile_m(n_fft_pad, f_pad, n_mels_pad, bt, budget=_VMEM_BUDGET):
    basis_bytes = n_fft_pad * 2 * f_pad * 2                      # bf16
    mel_bytes = f_pad * n_mels_pad * 2                           # bf16
    basis_b = basis_bytes * (1 if basis_bytes > _SINGLE_BUFFER_THRESHOLD else 2)
    mel_b = mel_bytes * (1 if mel_bytes > _SINGLE_BUFFER_THRESHOLD else 2)
    cap = max(_round_up(bt, 128), 128)
    chosen = None
    for cand in (1024, 512, 256, 128):
        tile_m = min(cand, cap)
        frames_b = 2 * tile_m * n_fft_pad * 2                    # bf16, double-buffered
        out_b = 2 * tile_m * n_mels_pad * 4                      # f32, double-buffered
        interm_b = tile_m * 2 * f_pad * 4 + tile_m * f_pad * 2   # ri (f32) + power (bf16)
        total = basis_b + mel_b + frames_b + out_b + interm_b + (2 << 20)
        chosen = (tile_m, total)
        if total <= budget:
            return chosen
    return chosen   # smallest candidate, even if over budget


# ----------------------------------------------------------------------------
# Pallas kernel: frames -> power spectrum -> mel projection (one frame tile)
# ----------------------------------------------------------------------------
def _melspec_kernel(f_pad, frames_ref, basis_ref, mel_ref, out_ref):
    # One wide MXU matmul: (tile_m, n_fft_pad) bf16 x (n_fft_pad, 2*f_pad) bf16
    ri = jnp.dot(frames_ref[...], basis_ref[...],
                 preferred_element_type=jnp.float32)     # (tile_m, 2*f_pad) f32
    real = ri[:, :f_pad]                                 # static, lane-aligned split
    imag = ri[:, f_pad:]
    power = (real * real + imag * imag).astype(jnp.bfloat16)   # power spectrogram
    # bf16 mel projection with f32 accumulation (MXU-native, no f32 emulation)
    out_ref[...] = jnp.dot(power, mel_ref[...],
                           preferred_element_type=jnp.float32)


def _const_spec(shape, nbytes):
    """Grid-constant (VMEM-resident) input; single-buffered when large."""
    if nbytes > _SINGLE_BUFFER_THRESHOLD:
        return pl.BlockSpec(shape, lambda i: (0, 0), pipeline_mode=pl.Buffered(1))
    return pl.BlockSpec(shape, lambda i: (0, 0))


def mel_spectrogram_pallas(frames_bf16, basis_bf16, mel_bf16, tile_m, vmem_limit_bytes):
    """frames: (bt_pad, n_fft_pad) bf16; basis: (n_fft_pad, 2*f_pad) bf16;
    mel: (f_pad, n_mels_pad) bf16  ->  (bt_pad, n_mels_pad) f32."""
    bt_pad, n_fft_pad = frames_bf16.shape
    two_f_pad = basis_bf16.shape[1]
    f_pad = two_f_pad // 2
    n_mels_pad = mel_bf16.shape[1]
    assert bt_pad % tile_m == 0

    kernel = functools.partial(_melspec_kernel, f_pad)

    flops = 2 * bt_pad * n_fft_pad * two_f_pad + 2 * bt_pad * f_pad * n_mels_pad
    bytes_accessed = (frames_bf16.size * 2 + basis_bf16.size * 2
                      + mel_bf16.size * 2 + bt_pad * n_mels_pad * 4)

    return pl.pallas_call(
        kernel,
        out_shape=jax.ShapeDtypeStruct((bt_pad, n_mels_pad), jnp.float32),
        grid_spec=pltpu.PrefetchScalarGridSpec(
            num_scalar_prefetch=0,
            grid=(bt_pad // tile_m,),
            in_specs=[
                pl.BlockSpec((tile_m, n_fft_pad), lambda i: (i, 0)),
                _const_spec((n_fft_pad, two_f_pad), basis_bf16.size * 2),
                _const_spec((f_pad, n_mels_pad), mel_bf16.size * 2),
            ],
            out_specs=pl.BlockSpec((tile_m, n_mels_pad), lambda i: (i, 0)),
        ),
        compiler_params=pltpu.CompilerParams(
            dimension_semantics=("parallel",),
            vmem_limit_bytes=int(vmem_limit_bytes),
        ),
        cost_estimate=pl.CostEstimate(
            flops=int(flops), transcendentals=0, bytes_accessed=int(bytes_accessed)),
    )(frames_bf16, basis_bf16, mel_bf16)


# ----------------------------------------------------------------------------
# Full forward pass (Mel_Spectrogram branch of Feature_Extraction_Layer)
# ----------------------------------------------------------------------------
def feature_extraction_layer(x, input_feature="Mel_Spectrogram",
                             sample_rate=16000, window_length=250,
                             hop_length=64, RGB=False):
    assert input_feature == "Mel_Spectrogram", "only Mel_Spectrogram branch implemented"
    num_channels = 3 if RGB else 1

    n_fft = int(window_length / 1000.0 * sample_rate)
    hop = int(hop_length / 1000.0 * sample_rate)
    n_mels = 40

    B, L = x.shape

    # --- padded sizes (lane / MXU aligned) ---
    n_freq = n_fft // 2 + 1
    n_fft_pad = _round_up(n_fft, 128)          # contraction dim, e.g. 4000 -> 4096
    f_pad = _round_up(n_freq, 128)             # frequency bins
    n_mels_pad = _round_up(n_mels, 128)        # lane-dense output (40 -> 128)

    pad = n_fft // 2
    T = 1 + (L + 2 * pad - n_fft) // hop
    BT = B * T

    tile_m, vmem_est = _choose_tile_m(n_fft_pad, f_pad, n_mels_pad, BT)
    bt_pad = _round_up(BT, tile_m)
    vmem_limit = int(min(max(vmem_est + (4 << 20), 32 << 20), 60 << 20))

    # --- framing (center=True, reflect padding), glue in XLA ---
    # TODO(synk): move framing into the kernel (slab DMA + in-kernel window
    #             construction) to remove the gather and ~n_fft/hop x traffic.
    xs = x.astype(jnp.bfloat16)                              # halves gather traffic
    xp = jnp.pad(xs, ((0, 0), (pad, pad)), mode="reflect")
    extra = n_fft_pad - n_fft
    if extra:
        # extra columns hit zero basis rows, so their contents are irrelevant
        xp = jnp.pad(xp, ((0, 0), (0, extra)))
    idx = jnp.arange(T)[:, None] * hop + jnp.arange(n_fft_pad)[None, :]
    frames = xp[:, idx].reshape(BT, n_fft_pad)               # (BT, n_fft_pad) bf16
    frames = jnp.pad(frames, ((0, bt_pad - BT), (0, 0)))

    # --- deterministic "weights": windowed DFT basis + mel filterbank (cached bf16) ---
    basis_np, mel_np = build_melspec_weights(sample_rate, n_fft, n_fft_pad,
                                             f_pad, n_mels, n_mels_pad)
    basis = jnp.asarray(basis_np)                            # (n_fft_pad, 2*f_pad) bf16
    melw = jnp.asarray(mel_np)                               # (f_pad, n_mels_pad) bf16

    # --- hot path in Pallas ---
    mel = mel_spectrogram_pallas(frames, basis, melw, tile_m, vmem_limit)
    mel = mel[:BT, :n_mels]                                  # drop row / lane padding
    mel = mel.reshape(B, T, n_mels).transpose(0, 2, 1)       # (B, n_mels, T)

    # --- nn.ZeroPad2d((1, 4, 0, 4)): (left, right, top, bottom) on (H=mel, W=time)
    mel = jnp.pad(mel, ((0, 0), (0, 4), (1, 4)))

    # --- unsqueeze(1) + repeat(1, num_channels, 1, 1) (broadcast, no HBM copies)
    out = jnp.broadcast_to(mel[:, None, :, :],
                           (B, num_channels, mel.shape[1], mel.shape[2]))
    return out


if __name__ == "__main__":
    key = jax.random.PRNGKey(0)
    B, L = 2, 512
    x = jax.random.normal(key, (B, L), dtype=jnp.float32)

    # small, module-consistent config: n_fft = int(0.25*512)=128, hop = int(0.064*512)=32
    sr = 512
    out = feature_extraction_layer(
        x, input_feature="Mel_Spectrogram",
        sample_rate=sr, window_length=250, hop_length=64, RGB=False,
    )
    jax.block_until_ready(out)
    assert out.shape == (2, 1, 44, 22), out.shape
    assert out.dtype == jnp.float32

    # --- pure-JAX f32 reference (same filterbank / window construction) ---
    n_fft = int(0.25 * sr)
    hop = int(0.064 * sr)
    pad = n_fft // 2
    wcos, wsin = windowed_dft_basis(n_fft)
    melfb = mel_filterbank(sr, n_fft, 40)
    xp = jnp.pad(x, ((0, 0), (pad, pad)), mode="reflect")
    T = 1 + (L + 2 * pad - n_fft) // hop
    idx = jnp.arange(T)[:, None] * hop + jnp.arange(n_fft)[None, :]
    fr = xp[:, idx]                                          # (B, T, n_fft) f32
    re = jnp.einsum("btn,fn->btf", fr, jnp.asarray(wcos))
    im = jnp.einsum("btn,fn->btf", fr, jnp.asarray(wsin))
    mel_ref = jnp.einsum("btf,mf->bmt", re * re + im * im, jnp.asarray(melfb))
    mel_ref = jnp.pad(mel_ref, ((0, 0), (0, 4), (1, 4)))[:, None]
    np.testing.assert_allclose(np.asarray(out), np.asarray(mel_ref),
                               rtol=0.1, atol=0.1)

    print("KERNEL_OK")
</pallas_src>

<mosaic_0001>
module attributes {stable_mosaic.version = 11 : i64} {
  func.func @_melspec_kernel(%arg0: i32, %arg1: memref<128x128xbf16, #tpu.memory_space<vmem>>, %arg2: memref<128x256xbf16, #tpu.memory_space<vmem>>, %arg3: memref<128x128xbf16, #tpu.memory_space<vmem>>, %arg4: memref<128x128xf32, #tpu.memory_space<vmem>>) attributes {dimension_semantics = [#tpu.dimension_semantics<parallel>], iteration_bounds = array<i64: 1>, scalar_prefetch = 0 : i64, scratch_operands = 0 : i64, tpu.core_type = #tpu.core_type<tc>, window_params = [{transform_indices = @transform_0, window_bounds = array<i64: 128, 128>}, {pipeline_mode = #tpu.pipeline_mode<synchronous>, transform_indices = @transform_1, window_bounds = array<i64: 128, 256>}, {pipeline_mode = #tpu.pipeline_mode<synchronous>, transform_indices = @transform_2, window_bounds = array<i64: 128, 128>}, {transform_indices = @transform_3, window_bounds = array<i64: 128, 128>}]} {
    %c0 = arith.constant 0 : index
    %c0_0 = arith.constant 0 : index
    %0 = vector.load %arg1[%c0, %c0_0] : memref<128x128xbf16, #tpu.memory_space<vmem>>, vector<128x128xbf16>
    %c0_1 = arith.constant 0 : index
    %c0_2 = arith.constant 0 : index
    %1 = vector.load %arg2[%c0_1, %c0_2] : memref<128x256xbf16, #tpu.memory_space<vmem>>, vector<128x256xbf16>
    %cst = arith.constant dense<0.000000e+00> : vector<128x256xf32>
    %2 = tpu.matmul %0, %1, %cst {dimension_numbers = #tpu.dot_dimension_numbers<[1], [0], [0], [1], [0, 0, 1, 1], [], []>} : vector<128x128xbf16>, vector<128x256xbf16>, vector<128x256xf32> -> vector<128x256xf32>
    %3 = vector.extract_strided_slice %2 {offsets = [0, 0], sizes = [128, 128], strides = [1, 1]} : vector<128x256xf32> to vector<128x128xf32>
    %4 = vector.extract_strided_slice %2 {offsets = [0, 128], sizes = [128, 128], strides = [1, 1]} : vector<128x256xf32> to vector<128x128xf32>
    %5 = arith.mulf %3, %3 : vector<128x128xf32>
    %6 = arith.mulf %4, %4 : vector<128x128xf32>
    %7 = arith.addf %5, %6 : vector<128x128xf32>
    %8 = arith.truncf %7 : vector<128x128xf32> to vector<128x128xbf16>
    %c0_3 = arith.constant 0 : index
    %c0_4 = arith.constant 0 : index
    %9 = vector.load %arg3[%c0_3, %c0_4] : memref<128x128xbf16, #tpu.memory_space<vmem>>, vector<128x128xbf16>
    %cst_5 = arith.constant dense<0.000000e+00> : vector<128x128xf32>
    %10 = tpu.matmul %8, %9, %cst_5 {dimension_numbers = #tpu.dot_dimension_numbers<[1], [0], [0], [1], [0, 0, 1, 1], [], []>} : vector<128x128xbf16>, vector<128x128xbf16>, vector<128x128xf32> -> vector<128x128xf32>
    %c0_6 = arith.constant 0 : index
    %c0_7 = arith.constant 0 : index
    %11 = vector.load %arg4[%c0_6, %c0_7] : memref<128x128xf32, #tpu.memory_space<vmem>>, vector<128x128xf32>
    tpu.vector_store %arg4[%c0_6, %c0_7], %10 {strides = array<i32>} : memref<128x128xf32, #tpu.memory_space<vmem>>, vector<128x128xf32>,
    return
  }
  func.func @transform_0(%arg0: i32) -> (i32, i32) {
    %c0_i32 = arith.constant 0 : i32
    %c0_i32_0 = arith.constant 0 : i32
    return %arg0, %c0_i32 : i32, i32
  }
  func.func @transform_1(%arg0: i32) -> (i32, i32) {
    %c0_i32 = arith.constant 0 : i32
    %c0_i32_0 = arith.constant 0 : i32
    %c0_i32_1 = arith.constant 0 : i32
    return %c0_i32, %c0_i32_0 : i32, i32
  }
  func.func @transform_2(%arg0: i32) -> (i32, i32) {
    %c0_i32 = arith.constant 0 : i32
    %c0_i32_0 = arith.constant 0 : i32
    %c0_i32_1 = arith.constant 0 : i32
    return %c0_i32, %c0_i32_0 : i32, i32
  }
  func.func @transform_3(%arg0: i32) -> (i32, i32) {
    %c0_i32 = arith.constant 0 : i32
    %c0_i32_0 = arith.constant 0 : i32
    return %arg0, %c0_i32 : i32, i32
  }
}

</mosaic_0001>

<llo_original>
// kernel: tpu_custom_call.1
$region0: #{tpu_custom_call.1}
  #allocation0 [shape = 'u32[]', space=smem, size = 0x4, offset = 0x4, fixed_abs, tag = 'smem constant byte address 0x4 - core index']
  #allocation1 [shape = 'u32[144,128]{1,0:T(1,128)}', space=vmem, size = 0x12000, scoped, tag = 'internal scratch']
  %s0 = inlined_call_operand.hbm [shape: bf16[128,128], index: 0, kind: input, shape index: {}]
  %s1 = inlined_call_operand.hbm [shape: bf16[128,256], index: 1, kind: input, shape index: {}]
  %s2 = inlined_call_operand.hbm [shape: bf16[128,128], index: 2, kind: input, shape index: {}]
  %s3 = inlined_call_operand.hbm [shape: f32[128,128], index: 3, kind: output, shape index: {}]
  %s4 = sld [smem:[#allocation0]]
  $region34: #{tpu_custom_call.1} parent=0
    _
  %s6 = ssub.s32 1, %s4
  %s7 = scalar_select 0, %s6, %s4
  $region1: #{tpu_custom_call.1} parent=0
    #allocation2 [shape = 'u8[32768]{0}', space=vmem, size = 0x8000, scoped, tag = 'input window, operand 0, single buffered']
    #allocation3 [shape = 's32[1]{0}', space=sflag, size = 0x4, scoped, tag = 'scoped memory for tpu_custom_call.1']
    #allocation4 [shape = 's32[1]{0}', space=sflag, size = 0x4, scoped, tag = 'scoped memory for tpu_custom_call.1']
    #allocation5 [shape = 'u8[65536]{0}', space=vmem, size = 0x10000, scoped, tag = 'input window, operand 1, single buffered']
    #allocation6 [shape = 's32[1]{0}', space=sflag, size = 0x4, scoped, tag = 'scoped memory for tpu_custom_call.1']
    #allocation7 [shape = 'u8[32768]{0}', space=vmem, size = 0x8000, scoped, tag = 'input window, operand 2, single buffered']
    #allocation8 [shape = 'u8[65536]{0}', space=vmem, size = 0x10000, scoped, tag = 'output window, operand 0, single buffered']
    %8 = vsyncpa [#allocation3], 0
    %9 = vsyncpa [#allocation6], 0
    %10 = vsyncpa [#allocation4], 0
    // Predicated region
    $region2: #{tpu_custom_call.1} parent=1 // pred_check
      _
    $region3: #{tpu_custom_call.1} parent=1 // pred_check_branch
      %12 = sbr.rel (0) target = $region5
    $region4: #{tpu_custom_call.1} parent=1 // pred_region
      %s14 = ssub.s32 1024, 1024
      %15 = vsyncadd [#allocation3], %s14
      %s16 = sshll.u32 [#allocation2], 4
      %s17 = int_to_ptr.vmem [resolvable:$true] %s16
      %22 = dma.hbm_to_vmem [thread:$0]  %s0, 1024, %s17, [#allocation3], 64, 64, 4
    $region5: #{tpu_custom_call.1} parent=1 // pred_fallthru
      _
    // Predicated region
    $region6: #{tpu_custom_call.1} parent=1 // pred_check
      _
    $region7: #{tpu_custom_call.1} parent=1 // pred_check_branch
      %24 = sbr.rel (0) target = $region9
    $region8: #{tpu_custom_call.1} parent=1 // pred_region
      %s26 = ssub.s32 2048, 2048
      %27 = vsyncadd [#allocation6], %s26
      %s28 = sshll.u32 [#allocation5], 4
      %s29 = int_to_ptr.vmem [resolvable:$true] %s28
      %34 = dma.hbm_to_vmem [thread:$0]  %s1, 2048, %s29, [#allocation6], 128, 128, 8
    $region9: #{tpu_custom_call.1} parent=1 // pred_fallthru
      _
    // Predicated region
    $region10: #{tpu_custom_call.1} parent=1 // pred_check
      _
    $region11: #{tpu_custom_call.1} parent=1 // pred_check_branch
      %36 = sbr.rel (0) target = $region13
    $region12: #{tpu_custom_call.1} parent=1 // pred_region
      %s38 = ssub.s32 1024, 1024
      %39 = vsyncadd [#allocation6], %s38
      %s40 = sshll.u32 [#allocation7], 4
      %s41 = int_to_ptr.vmem [resolvable:$true] %s40
      %46 = dma.hbm_to_vmem [thread:$0]  %s2, 1024, %s41, [#allocation6], 64, 64, 4
    $region13: #{tpu_custom_call.1} parent=1 // pred_fallthru
      _
    // Predicated region
    $region14: #{tpu_custom_call.1} parent=1 // pred_check
      _
    $region15: #{tpu_custom_call.1} parent=1 // pred_check_branch
      %48 = sbr.rel (0) target = $region17
    $region16: #{tpu_custom_call.1} parent=1 // pred_region
      %49 = dma.done [#allocation3], 1024
    $region17: #{tpu_custom_call.1} parent=1 // pred_fallthru
      _
    // Predicated region
    $region18: #{tpu_custom_call.1} parent=1 // pred_check
      _
    $region19: #{tpu_custom_call.1} parent=1 // pred_check_branch
      %51 = sbr.rel (0) target = $region21
    $region20: #{tpu_custom_call.1} parent=1 // pred_region
      %52 = dma.done [#allocation6], 2048
    $region21: #{tpu_custom_call.1} parent=1 // pred_fallthru
      _
    // Predicated region
    $region22: #{tpu_custom_call.1} parent=1 // pred_check
      _
    $region23: #{tpu_custom_call.1} parent=1 // pred_check_branch
      %54 = sbr.rel (0) target = $region25
    $region24: #{tpu_custom_call.1} parent=1 // pred_region
      %55 = dma.done [#allocation6], 1024
    $region25: #{tpu_custom_call.1} parent=1 // pred_fallthru
      _
    %v57 = vld [vmem:[#allocation2] sm:$0xf]
    %v58 = vld [vmem:[#allocation2 + $0x4] sm:$0xf]
    %v59 = vld [vmem:[#allocation2 + $0x8] sm:$0xf]
    %v60 = vld [vmem:[#allocation2 + $0xc] sm:$0xf]
    %v61 = vld [vmem:[#allocation2 + $0x10] sm:$0xf]
    %v62 = vld [vmem:[#allocation2 + $0x14] sm:$0xf]
    %v63 = vld [vmem:[#allocation2 + $0x18] sm:$0xf]
    %v64 = vld [vmem:[#allocation2 + $0x1c] sm:$0xf]
    %v65 = vld [vmem:[#allocation2 + $0x20] sm:$0xf]
    %v66 = vld [vmem:[#allocation2 + $0x24] sm:$0xf]
    %v67 = vld [vmem:[#allocation2 + $0x28] sm:$0xf]
    %v68 = vld [vmem:[#allocation2 + $0x2c] sm:$0xf]
    %v69 = vld [vmem:[#allocation2 + $0x30] sm:$0xf]
    %v70 = vld [vmem:[#allocation2 + $0x34] sm:$0xf]
    %v71 = vld [vmem:[#allocation2 + $0x38] sm:$0xf]
    %v72 = vld [vmem:[#allocation2 + $0x3c] sm:$0xf]
    %v73 = vld [vmem:[#allocation5] sm:$0xff]
    %v74 = vld [vmem:[#allocation5 + $0x8] sm:$0xff]
    %v75 = vld [vmem:[#allocation5 + $0x10] sm:$0xff]
    %v76 = vld [vmem:[#allocation5 + $0x18] sm:$0xff]
    %v77 = vld [vmem:[#allocation5 + $0x20] sm:$0xff]
    %v78 = vld [vmem:[#allocation5 + $0x28] sm:$0xff]
    %v79 = vld [vmem:[#allocation5 + $0x30] sm:$0xff]
    %v80 = vld [vmem:[#allocation5 + $0x38] sm:$0xff]
    %v81 = vld [vmem:[#allocation5 + $0x40] sm:$0xff]
    %v82 = vld [vmem:[#allocation5 + $0x48] sm:$0xff]
    %v83 = vld [vmem:[#allocation5 + $0x50] sm:$0xff]
    %v84 = vld [vmem:[#allocation5 + $0x58] sm:$0xff]
    %v85 = vld [vmem:[#allocation5 + $0x60] sm:$0xff]
    %v86 = vld [vmem:[#allocation5 + $0x68] sm:$0xff]
    %v87 = vld [vmem:[#allocation5 + $0x70] sm:$0xff]
    %v88 = vld [vmem:[#allocation5 + $0x78] sm:$0xff]
    %v105 = vunpack.c.l.b16 %v57
    %v106 = vunpack.c.l.b16 %v58
    %v107 = vunpack.c.l.b16 %v59
    %v108 = vunpack.c.l.b16 %v60
    %v109 = vunpack.c.l.b16 %v61
    %v110 = vunpack.c.l.b16 %v62
    %v111 = vunpack.c.l.b16 %v63
    %v112 = vunpack.c.l.b16 %v64
    %v113 = vunpack.c.l.b16 %v65
    %v114 = vunpack.c.l.b16 %v66
    %v115 = vunpack.c.l.b16 %v67
    %v116 = vunpack.c.l.b16 %v68
    %v117 = vunpack.c.l.b16 %v69
    %v118 = vunpack.c.l.b16 %v70
    %v119 = vunpack.c.l.b16 %v71
    %v120 = vunpack.c.l.b16 %v72
    %v121 = vpack.c.b16 %v106, %v105
    %v122 = vpack.c.b16 %v108, %v107
    %v123 = vpack.c.b16 %v110, %v109
    %v124 = vpack.c.b16 %v112, %v111
    %v125 = vpack.c.b16 %v114, %v113
    %v126 = vpack.c.b16 %v116, %v115
    %v127 = vpack.c.b16 %v118, %v117
    %v128 = vpack.c.b16 %v120, %v119
    %v153 = vunpack.c.l.b16 %v73
    %v154 = vunpack.c.h.b16 %v73
    %v155 = vunpack.c.l.b16 %v74
    %v156 = vunpack.c.h.b16 %v74
    %v157 = vunpack.c.l.b16 %v75
    %v158 = vunpack.c.h.b16 %v75
    %v159 = vunpack.c.l.b16 %v76
    %v160 = vunpack.c.h.b16 %v76
    %v161 = vunpack.c.l.b16 %v77
    %v162 = vunpack.c.h.b16 %v77
    %v163 = vunpack.c.l.b16 %v78
    %v164 = vunpack.c.h.b16 %v78
    %v165 = vunpack.c.l.b16 %v79
    %v166 = vunpack.c.h.b16 %v79
    %v167 = vunpack.c.l.b16 %v80
    %v168 = vunpack.c.h.b16 %v80
    %v169 = vunpack.c.l.b16 %v81
    %v170 = vunpack.c.h.b16 %v81
    %v171 = vunpack.c.l.b16 %v82
    %v172 = vunpack.c.h.b16 %v82
    %v173 = vunpack.c.l.b16 %v83
    %v174 = vunpack.c.h.b16 %v83
    %v175 = vunpack.c.l.b16 %v84
    %v176 = vunpack.c.h.b16 %v84
    %v177 = vunpack.c.l.b16 %v85
    %v178 = vunpack.c.h.b16 %v85
    %v179 = vunpack.c.l.b16 %v86
    %v180 = vunpack.c.h.b16 %v86
    %v181 = vunpack.c.l.b16 %v87
    %v182 = vunpack.c.h.b16 %v87
    %v183 = vunpack.c.l.b16 %v88
    %v184 = vunpack.c.h.b16 %v88
    %v185 = vpack.c.b16 %v155, %v153
    %v186 = vpack.c.b16 %v156, %v154
    %v187 = vpack.c.b16 %v159, %v157
    %v188 = vpack.c.b16 %v160, %v158
    %v189 = vpack.c.b16 %v163, %v161
    %v190 = vpack.c.b16 %v164, %v162
    %v191 = vpack.c.b16 %v167, %v165
    %v192 = vpack.c.b16 %v168, %v166
    %v193 = vpack.c.b16 %v171, %v169
    %v194 = vpack.c.b16 %v172, %v170
    %v195 = vpack.c.b16 %v175, %v173
    %v196 = vpack.c.b16 %v176, %v174
    %v197 = vpack.c.b16 %v179, %v177
    %v198 = vpack.c.b16 %v180, %v178
    %v199 = vpack.c.b16 %v183, %v181
    %v200 = vpack.c.b16 %v184, %v182
    %217 = vmatprep.subr.bf16.mxu0 %v186
    %218 = vmatpush1.bf16.msra.mxu0 %v185
    %219 = vmatprep.subr.bf16.mxu0 %v188
    %220 = vmatpush1.bf16.msra.mxu0 %v187
    %221 = vmatprep.subr.bf16.mxu0 %v190
    %222 = vmatpush1.bf16.msra.mxu0 %v189
    %223 = vmatprep.subr.bf16.mxu0 %v192
    %224 = vmatpush1.bf16.msra.mxu0 %v191
    %225 = vmatprep.subr.bf16.mxu0 %v194
    %226 = vmatpush1.bf16.msra.mxu0 %v193
    %227 = vmatprep.subr.bf16.mxu0 %v196
    %228 = vmatpush1.bf16.msra.mxu0 %v195
    %229 = vmatprep.subr.bf16.mxu0 %v198
    %230 = vmatpush1.bf16.msra.mxu0 %v197
    %231 = vmatprep.subr.bf16.mxu0 %v200
    %232 = vmatpush1.bf16.msra.mxu0 %v199
    %233 = vmatprep.subr.bf16.mxu0 0
    %234 = vmatpush1.bf16.msra.mxu0 0
    %235 = vmatprep.subr.bf16.mxu0 0
    %236 = vmatpush1.bf16.msra.mxu0 0
    %237 = vmatprep.subr.bf16.mxu0 0
    %238 = vmatpush1.bf16.msra.mxu0 0
    %239 = vmatprep.subr.bf16.mxu0 0
    %240 = vmatpush1.bf16.msra.mxu0 0
    %241 = vmatprep.subr.bf16.mxu0 0
    %242 = vmatpush1.bf16.msra.mxu0 0
    %243 = vmatprep.subr.bf16.mxu0 0
    %244 = vmatpush1.bf16.msra.mxu0 0
    %245 = vmatprep.subr.bf16.mxu0 0
    %246 = vmatpush1.bf16.msra.mxu0 0
    %247 = vmatprep.subr.bf16.mxu0 0
    %248 = vmatpush1.bf16.msra.mxu0 0
    %249 = vmatprep.mubr.bf16.mxu0 0
    %250 = vmatmul.mubr.bf16.gmra.mrb[0].mxu0 %v121
    %v251 = vpop.f32.mrb[0].mxu0
    %v252 = vadd.f32 0.0, %v251
    %v253 = vpop.f32.mrb[0].mxu0
    %v254 = vadd.f32 0.0, %v253
    %v255 = vpop.f32.mrb[0].mxu0
    %v256 = vadd.f32 0.0, %v255
    %v257 = vpop.f32.mrb[0].mxu0
    %v258 = vadd.f32 0.0, %v257
    %259 = vmatprep.mubr.bf16.mxu0 0
    %260 = vmatmul.mubr.bf16.gmra.mrb[0].mxu0 %v122
    %v261 = vpop.f32.mrb[0].mxu0
    %v262 = vadd.f32 0.0, %v261
    %v263 = vpop.f32.mrb[0].mxu0
    %v264 = vadd.f32 0.0, %v263
    %v265 = vpop.f32.mrb[0].mxu0
    %v266 = vadd.f32 0.0, %v265
    %v267 = vpop.f32.mrb[0].mxu0
    %v268 = vadd.f32 0.0, %v267
    %269 = vmatprep.mubr.bf16.mxu0 0
    %270 = vmatmul.mubr.bf16.gmra.mrb[0].mxu0 %v123
    %v271 = vpop.f32.mrb[0].mxu0
    %v272 = vadd.f32 0.0, %v271
    %v273 = vpop.f32.mrb[0].mxu0
    %v274 = vadd.f32 0.0, %v273
    %v275 = vpop.f32.mrb[0].mxu0
    %v276 = vadd.f32 0.0, %v275
    %v277 = vpop.f32.mrb[0].mxu0
    %v278 = vadd.f32 0.0, %v277
    %279 = vmatprep.mubr.bf16.mxu0 0
    %280 = vmatmul.mubr.bf16.gmra.mrb[0].mxu0 %v124
    %v281 = vpop.f32.mrb[0].mxu0
    %v282 = vadd.f32 0.0, %v281
    %v283 = vpop.f32.mrb[0].mxu0
    %v284 = vadd.f32 0.0, %v283
    %v285 = vpop.f32.mrb[0].mxu0
    %v286 = vadd.f32 0.0, %v285
    %v287 = vpop.f32.mrb[0].mxu0
    %v288 = vadd.f32 0.0, %v287
    %289 = vmatprep.mubr.bf16.mxu0 0
    %290 = vmatmul.mubr.bf16.gmra.mrb[0].mxu0 %v125
    %v291 = vpop.f32.mrb[0].mxu0
    %v292 = vadd.f32 0.0, %v291
    %v293 = vpop.f32.mrb[0].mxu0
    %v294 = vadd.f32 0.0, %v293
    %v295 = vpop.f32.mrb[0].mxu0
    %v296 = vadd.f32 0.0, %v295
    %v297 = vpop.f32.mrb[0].mxu0
    %v298 = vadd.f32 0.0, %v297
    %299 = vmatprep.mubr.bf16.mxu0 0
    %300 = vmatmul.mubr.bf16.gmra.mrb[0].mxu0 %v126
    %v301 = vpop.f32.mrb[0].mxu0
    %v302 = vadd.f32 0.0, %v301
    %v303 = vpop.f32.mrb[0].mxu0
    %v304 = vadd.f32 0.0, %v303
    %v305 = vpop.f32.mrb[0].mxu0
    %v306 = vadd.f32 0.0, %v305
    %v307 = vpop.f32.mrb[0].mxu0
    %v308 = vadd.f32 0.0, %v307
    %309 = vmatprep.mubr.bf16.mxu0 0
    %310 = vmatmul.mubr.bf16.gmra.mrb[0].mxu0 %v127
    %v311 = vpop.f32.mrb[0].mxu0
    %v312 = vadd.f32 0.0, %v311
    %v313 = vpop.f32.mrb[0].mxu0
    %v314 = vadd.f32 0.0, %v313
    %v315 = vpop.f32.mrb[0].mxu0
    %v316 = vadd.f32 0.0, %v315
    %v317 = vpop.f32.mrb[0].mxu0
    %v318 = vadd.f32 0.0, %v317
    %319 = vmatprep.mubr.bf16.mxu0 0
    %320 = vmatmul.mubr.bf16.gmra.mrb[0].mxu0 %v128
    %v321 = vpop.f32.mrb[0].mxu0
    %v322 = vadd.f32 0.0, %v321
    %v323 = vpop.f32.mrb[0].mxu0
    %v324 = vadd.f32 0.0, %v323
    %v325 = vpop.f32.mrb[0].mxu0
    %v326 = vadd.f32 0.0, %v325
    %v327 = vpop.f32.mrb[0].mxu0
    %v328 = vadd.f32 0.0, %v327
    %329 = vdwg.mxu0
    %v330 = vmul.f32 %v252, %v252
    %v331 = vmul.f32 %v256, %v256
    %v332 = vmul.f32 %v262, %v262
    %v333 = vmul.f32 %v266, %v266
    %v334 = vmul.f32 %v272, %v272
    %v335 = vmul.f32 %v276, %v276
    %v336 = vmul.f32 %v282, %v282
    %v337 = vmul.f32 %v286, %v286
    %v338 = vmul.f32 %v292, %v292
    %v339 = vmul.f32 %v296, %v296
    %v340 = vmul.f32 %v302, %v302
    %v341 = vmul.f32 %v306, %v306
    %v342 = vmul.f32 %v312, %v312
    %v343 = vmul.f32 %v316, %v316
    %v344 = vmul.f32 %v322, %v322
    %v345 = vmul.f32 %v326, %v326
    %v346 = vmul.f32 %v254, %v254
    %v347 = vmul.f32 %v258, %v258
    %v348 = vmul.f32 %v264, %v264
    %v349 = vmul.f32 %v268, %v268
    %v350 = vmul.f32 %v274, %v274
    %v351 = vmul.f32 %v278, %v278
    %v352 = vmul.f32 %v284, %v284
    %v353 = vmul.f32 %v288, %v288
    %v354 = vmul.f32 %v294, %v294
    %v355 = vmul.f32 %v298, %v298
    %v356 = vmul.f32 %v304, %v304
    %v357 = vmul.f32 %v308, %v308
    %v358 = vmul.f32 %v314, %v314
    %v359 = vmul.f32 %v318, %v318
    %v360 = vmul.f32 %v324, %v324
    %v361 = vmul.f32 %v328, %v328
    %v362 = vadd.f32 %v330, %v346
    %v363 = vadd.f32 %v331, %v347
    %v364 = vadd.f32 %v332, %v348
    %v365 = vadd.f32 %v333, %v349
    %v366 = vadd.f32 %v334, %v350
    %v367 = vadd.f32 %v335, %v351
    %v368 = vadd.f32 %v336, %v352
    %v369 = vadd.f32 %v337, %v353
    %v370 = vadd.f32 %v338, %v354
    %v371 = vadd.f32 %v339, %v355
    %v372 = vadd.f32 %v340, %v356
    %v373 = vadd.f32 %v341, %v357
    %v374 = vadd.f32 %v342, %v358
    %v375 = vadd.f32 %v343, %v359
    %v376 = vadd.f32 %v344, %v360
    %v377 = vadd.f32 %v345, %v361
    %v378 = vpack.c.bf16 %v363, %v362
    %v379 = vpack.c.bf16 %v365, %v364
    %v380 = vpack.c.bf16 %v367, %v366
    %v381 = vpack.c.bf16 %v369, %v368
    %v382 = vpack.c.bf16 %v371, %v370
    %v383 = vpack.c.bf16 %v373, %v372
    %v384 = vpack.c.bf16 %v375, %v374
    %v385 = vpack.c.bf16 %v377, %v376
    %v386 = vld [vmem:[#allocation7] sm:$0xf]
    %v387 = vld [vmem:[#allocation7 + $0x4] sm:$0xf]
    %v388 = vld [vmem:[#allocation7 + $0x8] sm:$0xf]
    %v389 = vld [vmem:[#allocation7 + $0xc] sm:$0xf]
    %v390 = vld [vmem:[#allocation7 + $0x10] sm:$0xf]
    %v391 = vld [vmem:[#allocation7 + $0x14] sm:$0xf]
    %v392 = vld [vmem:[#allocation7 + $0x18] sm:$0xf]
    %v393 = vld [vmem:[#allocation7 + $0x1c] sm:$0xf]
    %v394 = vld [vmem:[#allocation7 + $0x20] sm:$0xf]
    %v395 = vld [vmem:[#allocation7 + $0x24] sm:$0xf]
    %v396 = vld [vmem:[#allocation7 + $0x28] sm:$0xf]
    %v397 = vld [vmem:[#allocation7 + $0x2c] sm:$0xf]
    %v398 = vld [vmem:[#allocation7 + $0x30] sm:$0xf]
    %v399 = vld [vmem:[#allocation7 + $0x34] sm:$0xf]
    %v400 = vld [vmem:[#allocation7 + $0x38] sm:$0xf]
    %v401 = vld [vmem:[#allocation7 + $0x3c] sm:$0xf]
    %v418 = vunpack.c.l.b16 %v386
    %v419 = vunpack.c.l.b16 %v387
    %v420 = vunpack.c.l.b16 %v388
    %v421 = vunpack.c.l.b16 %v389
    %v422 = vunpack.c.l.b16 %v390
    %v423 = vunpack.c.l.b16 %v391
    %v424 = vunpack.c.l.b16 %v392
    %v425 = vunpack.c.l.b16 %v393
    %v426 = vunpack.c.l.b16 %v394
    %v427 = vunpack.c.l.b16 %v395
    %v428 = vunpack.c.l.b16 %v396
    %v429 = vunpack.c.l.b16 %v397
    %v430 = vunpack.c.l.b16 %v398
    %v431 = vunpack.c.l.b16 %v399
    %v432 = vunpack.c.l.b16 %v400
    %v433 = vunpack.c.l.b16 %v401
    %v434 = vpack.c.b16 %v419, %v418
    %v435 = vpack.c.b16 %v421, %v420
    %v436 = vpack.c.b16 %v423, %v422
    %v437 = vpack.c.b16 %v425, %v424
    %v438 = vpack.c.b16 %v427, %v426
    %v439 = vpack.c.b16 %v429, %v428
    %v440 = vpack.c.b16 %v431, %v430
    %v441 = vpack.c.b16 %v433, %v432
    %450 = vmatprep.subr.bf16.mxu0 0
    %451 = vmatpush1.bf16.msra.mxu0 %v434
    %452 = vmatprep.subr.bf16.mxu0 0
    %453 = vmatpush1.bf16.msra.mxu0 %v435
    %454 = vmatprep.subr.bf16.mxu0 0
    %455 = vmatpush1.bf16.msra.mxu0 %v436
    %456 = vmatprep.subr.bf16.mxu0 0
    %457 = vmatpush1.bf16.msra.mxu0 %v437
    %458 = vmatprep.subr.bf16.mxu0 0
    %459 = vmatpush1.bf16.msra.mxu0 %v438
    %460 = vmatprep.subr.bf16.mxu0 0
    %461 = vmatpush1.bf16.msra.mxu0 %v439
    %462 = vmatprep.subr.bf16.mxu0 0
    %463 = vmatpush1.bf16.msra.mxu0 %v440
    %464 = vmatprep.subr.bf16.mxu0 0
    %465 = vmatpush1.bf16.msra.mxu0 %v441
    %466 = vmatprep.subr.bf16.mxu0 0
    %467 = vmatpush1.bf16.msra.mxu0 0
    %468 = vmatprep.subr.bf16.mxu0 0
    %469 = vmatpush1.bf16.msra.mxu0 0
    %470 = vmatprep.subr.bf16.mxu0 0
    %471 = vmatpush1.bf16.msra.mxu0 0
    %472 = vmatprep.subr.bf16.mxu0 0
    %473 = vmatpush1.bf16.msra.mxu0 0
    %474 = vmatprep.subr.bf16.mxu0 0
    %475 = vmatpush1.bf16.msra.mxu0 0
    %476 = vmatprep.subr.bf16.mxu0 0
    %477 = vmatpush1.bf16.msra.mxu0 0
    %478 = vmatprep.subr.bf16.mxu0 0
    %479 = vmatpush1.bf16.msra.mxu0 0
    %480 = vmatprep.subr.bf16.mxu0 0
    %481 = vmatpush1.bf16.msra.mxu0 0
    %482 = vmatprep.mubr.bf16.mxu0 0
    %483 = vmatmul.mubr.bf16.gmra.mrb[0].mxu0 %v378
    %v484 = vpop.f32.mrb[0].mxu0
    %v485 = vadd.f32 0.0, %v484
    %v486 = vpop.f32.mrb[0].mxu0
    %v487 = vpop.f32.mrb[0].mxu0
    %v488 = vadd.f32 0.0, %v487
    %v489 = vpop.f32.mrb[0].mxu0
    %490 = vmatprep.mubr.bf16.mxu0 0
    %491 = vmatmul.mubr.bf16.gmra.mrb[0].mxu0 %v379
    %v492 = vpop.f32.mrb[0].mxu0
    %v493 = vadd.f32 0.0, %v492
    %v494 = vpop.f32.mrb[0].mxu0
    %v495 = vpop.f32.mrb[0].mxu0
    %v496 = vadd.f32 0.0, %v495
    %v497 = vpop.f32.mrb[0].mxu0
    %498 = vmatprep.mubr.bf16.mxu0 0
    %499 = vmatmul.mubr.bf16.gmra.mrb[0].mxu0 %v380
    %v500 = vpop.f32.mrb[0].mxu0
    %v501 = vadd.f32 0.0, %v500
    %v502 = vpop.f32.mrb[0].mxu0
    %v503 = vpop.f32.mrb[0].mxu0
    %v504 = vadd.f32 0.0, %v503
    %v505 = vpop.f32.mrb[0].mxu0
    %506 = vmatprep.mubr.bf16.mxu0 0
    %507 = vmatmul.mubr.bf16.gmra.mrb[0].mxu0 %v381
    %v508 = vpop.f32.mrb[0].mxu0
    %v509 = vadd.f32 0.0, %v508
    %v510 = vpop.f32.mrb[0].mxu0
    %v511 = vpop.f32.mrb[0].mxu0
    %v512 = vadd.f32 0.0, %v511
    %v513 = vpop.f32.mrb[0].mxu0
    %514 = vmatprep.mubr.bf16.mxu0 0
    %515 = vmatmul.mubr.bf16.gmra.mrb[0].mxu0 %v382
    %v516 = vpop.f32.mrb[0].mxu0
    %v517 = vadd.f32 0.0, %v516
    %v518 = vpop.f32.mrb[0].mxu0
    %v519 = vpop.f32.mrb[0].mxu0
    %v520 = vadd.f32 0.0, %v519
    %v521 = vpop.f32.mrb[0].mxu0
    %522 = vmatprep.mubr.bf16.mxu0 0
    %523 = vmatmul.mubr.bf16.gmra.mrb[0].mxu0 %v383
    %v524 = vpop.f32.mrb[0].mxu0
    %v525 = vadd.f32 0.0, %v524
    %v526 = vpop.f32.mrb[0].mxu0
    %v527 = vpop.f32.mrb[0].mxu0
    %v528 = vadd.f32 0.0, %v527
    %v529 = vpop.f32.mrb[0].mxu0
    %530 = vmatprep.mubr.bf16.mxu0 0
    %531 = vmatmul.mubr.bf16.gmra.mrb[0].mxu0 %v384
    %v532 = vpop.f32.mrb[0].mxu0
    %v533 = vadd.f32 0.0, %v532
    %v534 = vpop.f32.mrb[0].mxu0
    %v535 = vpop.f32.mrb[0].mxu0
    %v536 = vadd.f32 0.0, %v535
    %v537 = vpop.f32.mrb[0].mxu0
    %538 = vmatprep.mubr.bf16.mxu0 0
    %539 = vmatmul.mubr.bf16.gmra.mrb[0].mxu0 %v385
    %v540 = vpop.f32.mrb[0].mxu0
    %v541 = vadd.f32 0.0, %v540
    %v542 = vpop.f32.mrb[0].mxu0
    %v543 = vpop.f32.mrb[0].mxu0
    %v544 = vadd.f32 0.0, %v543
    %v545 = vpop.f32.mrb[0].mxu0
    %546 = vdwg.mxu0
    %547 = vst [vmem:[#allocation8] sm:$0xff] %v485
    %548 = vst [vmem:[#allocation8 + $0x8] sm:$0xff] %v488
    %549 = vst [vmem:[#allocation8 + $0x10] sm:$0xff] %v493
    %550 = vst [vmem:[#allocation8 + $0x18] sm:$0xff] %v496
    %551 = vst [vmem:[#allocation8 + $0x20] sm:$0xff] %v501
    %552 = vst [vmem:[#allocation8 + $0x28] sm:$0xff] %v504
    %553 = vst [vmem:[#allocation8 + $0x30] sm:$0xff] %v509
    %554 = vst [vmem:[#allocation8 + $0x38] sm:$0xff] %v512
    %555 = vst [vmem:[#allocation8 + $0x40] sm:$0xff] %v517
    %556 = vst [vmem:[#allocation8 + $0x48] sm:$0xff] %v520
    %557 = vst [vmem:[#allocation8 + $0x50] sm:$0xff] %v525
    %558 = vst [vmem:[#allocation8 + $0x58] sm:$0xff] %v528
    %559 = vst [vmem:[#allocation8 + $0x60] sm:$0xff] %v533
    %560 = vst [vmem:[#allocation8 + $0x68] sm:$0xff] %v536
    %561 = vst [vmem:[#allocation8 + $0x70] sm:$0xff] %v541
    %562 = vst [vmem:[#allocation8 + $0x78] sm:$0xff] %v544
    // Predicated region
    $region26: #{tpu_custom_call.1} parent=1 // pred_check
      _
    $region27: #{tpu_custom_call.1} parent=1 // pred_check_branch
      %564 = sbr.rel (0) target = $region29
    $region28: #{tpu_custom_call.1} parent=1 // pred_region
      %s566 = ssub.s32 2048, 2048
      %567 = vsyncadd [#allocation4], %s566
      %s568 = sshll.u32 [#allocation8], 4
      %s569 = int_to_ptr.vmem [resolvable:$true] %s568
      %574 = dma.vmem_to_hbm [thread:$0]  %s569, 2048, %s3, [#allocation4], 128, 128, 8
    $region29: #{tpu_custom_call.1} parent=1 // pred_fallthru
      _
    // Predicated region
    $region30: #{tpu_custom_call.1} parent=1 // pred_check
      _
    $region31: #{tpu_custom_call.1} parent=1 // pred_check_branch
      %576 = sbr.rel (0) target = $region33
    $region32: #{tpu_custom_call.1} parent=1 // pred_region
      %577 = dma.done [#allocation4], 2048
    $region33: #{tpu_custom_call.1} parent=1 // pred_fallthru
      _
    %578 = vsyncpa [#allocation3], 1
    %579 = vsyncpa [#allocation6], 1
    %580 = vsyncpa [#allocation4], 1

</llo_original>
